<compile_context>
chip_gen: v6e
topology: v6e:2x2x1
jax: 0.10.0
libtpu: 0.0.40
codegen_flags: <defaults>
</compile_context>

<pallas_src>
import jax
import jax.numpy as jnp
from jax.experimental import pallas as pl
from jax.experimental.pallas import tpu as pltpu


def _round_up(n, m):
    return ((n + m - 1) // m) * m


def _cdiv(a, b):
    return (a + b - 1) // b


def _vmem_capacity_bytes(default=64 * 1024 * 1024):
    try:
        info = pltpu.get_tpu_info()
        cap = getattr(info, "vmem_capacity_bytes", None)
        if cap:
            return int(cap)
    except Exception:
        pass
    return default


def windowed_apply(x, weight, bias, *, window_len, step, tw_max=512):
    """Pallas equivalent of WindowedApply(window_len, step, f=Flatten+Linear+ReLU).

    x:      (B, C, T) float32
    weight: (C*window_len, hidden)   (transposed PyTorch Linear weight)
    bias:   (1, hidden)
    returns (B, W, hidden)  with W = (T - window_len)//step + 1
    """
    B, C, T = x.shape
    assert T >= window_len, "time dimension must be at least window_len"
    W = (T - window_len) // step + 1
    hidden = weight.shape[1]
    assert weight.shape[0] == C * window_len

    r = _cdiv(window_len, step)          # phases per window
    CS = C * step                        # per-phase contraction width
    K = r * CS                           # merged contraction
    K_pad = _round_up(K, 128)            # lane-dense lhs / aligned weight rows

    out_dtype = x.dtype
    out_isz = jnp.dtype(out_dtype).itemsize

    # ---- generation-aware VMEM budget --------------------------------------
    budget = int(0.75 * _vmem_capacity_bytes())

    # ---- hidden tiling (lane-dense; resident weight block <= ~budget/3) ----
    H128 = _round_up(hidden, 128)
    TH = H128
    while TH > 128 and K_pad * TH * 2 > budget // 3:
        TH = max(128, _round_up(TH // 2, 128))
    H_pad = _round_up(H128, TH)
    n_ht = H_pad // TH

    # ---- window tiling (balanced, multiple of 16, VMEM-bounded) ------------
    gran = 16
    TW_min = max(gran, _round_up(max(r - 1, 1), gran))
    tw_cap = max(TW_min, (int(tw_max) // gran) * gran)
    n_wt = _cdiv(W, tw_cap)
    TW = max(TW_min, _round_up(_cdiv(W, n_wt), gran))

    fixed = 2 * K_pad * TH * 2 + 2 * TH * 4          # weight (<=2 bufs) + bias

    def _step_bytes(tw):
        return (4 * tw * CS * 2          # two y blocks, double-buffered (bf16)
                + 2 * tw * CS * 2        # in-kernel concat temp
                + tw * K_pad * 2         # merged lhs temp
                + tw * TH * 4            # f32 accumulator
                + 2 * tw * TH * out_isz) # output block, double-buffered

    while TW > TW_min and fixed + _step_bytes(TW) > budget:
        TW = max(TW_min, _round_up(TW // 2, gran))
    n_wt = _cdiv(W, TW)
    TW = max(TW_min, _round_up(_cdiv(W, n_wt), gran))   # rebalance last tile
    W_pad = n_wt * TW

    K_chunks = W_pad + TW            # keeps the second y block of the last tile in-bounds
    T_pad = K_chunks * step

    # ---- wrapper relayout: ~|x| bytes, NO window duplication ----------------
    xb = x.astype(jnp.bfloat16)
    if T >= T_pad:
        xb = xb[:, :, :T_pad]
    else:
        xb = jnp.pad(xb, ((0, 0), (0, 0), (0, T_pad - T)))
    # y[b, k, c*step + s] = x[b, c, k*step + s]
    # TODO(synk): this relayout could be fused into the kernel (read x directly
    # + in-kernel transpose) to save one HBM round trip on memory-bound shapes.
    y = (xb.reshape(B, C, K_chunks, step)
           .transpose(0, 2, 1, 3)
           .reshape(B, K_chunks, CS))

    # Phase-reordered weight:
    #   w_flat[(j*C + c)*step + s, h] = weight[c*window_len + j*step + s, h]
    # (rows with j*step+s >= window_len are zero — handles step not dividing
    #  window_len; extra K_pad-K rows are zero so lhs padding is harmless.)
    w3 = weight.reshape(C, window_len, hidden)
    w3 = jnp.pad(w3, ((0, 0), (0, r * step - window_len), (0, 0)))
    w_flat = (w3.reshape(C, r, step, hidden)
                .transpose(1, 0, 2, 3)
                .reshape(K, hidden))
    w_flat = jnp.pad(w_flat, ((0, K_pad - K), (0, H_pad - hidden))).astype(jnp.bfloat16)
    b_pad = jnp.pad(bias.astype(jnp.float32), ((0, 0), (0, H_pad - hidden)))

    def kernel(ya_ref, yb_ref, w_ref, b_ref, o_ref):
        # ya/yb: adjacent (TW, CS) chunk tiles of y; together they cover the
        # TW + r - 1 chunks this window tile needs (r - 1 <= TW by construction).
        yy = jnp.concatenate([ya_ref[...], yb_ref[...]], axis=0)   # (2*TW, CS) bf16
        parts = [yy[j:j + TW, :] for j in range(r)]                # phase slices
        if K_pad > K:
            parts.append(jnp.zeros((TW, K_pad - K), dtype=yy.dtype))
        lhs = parts[0] if len(parts) == 1 else jnp.concatenate(parts, axis=1)
        acc = jnp.dot(lhs, w_ref[...], preferred_element_type=jnp.float32)
        o_ref[...] = jnp.maximum(acc + b_ref[...], 0.0).astype(o_ref.dtype)

    vmem_limit = int(min(budget, max(16 * 1024 * 1024,
                                     int(1.5 * (fixed + _step_bytes(TW))))))

    def build(single_buffer_weight):
        if single_buffer_weight:
            w_spec = pl.BlockSpec((K_pad, TH), lambda ht, b, wt: (0, ht),
                                  pipeline_mode=pl.Buffered(1))
        else:
            w_spec = pl.BlockSpec((K_pad, TH), lambda ht, b, wt: (0, ht))
        return pl.pallas_call(
            kernel,
            out_shape=jax.ShapeDtypeStruct((B, W_pad, H_pad), out_dtype),
            grid_spec=pl.GridSpec(
                grid=(n_ht, B, n_wt),
                in_specs=[
                    pl.BlockSpec((None, TW, CS), lambda ht, b, wt: (b, wt, 0)),
                    pl.BlockSpec((None, TW, CS), lambda ht, b, wt: (b, wt + 1, 0)),
                    w_spec,
                    pl.BlockSpec((1, TH), lambda ht, b, wt: (0, ht)),
                ],
                out_specs=pl.BlockSpec((None, TW, TH), lambda ht, b, wt: (b, wt, ht)),
            ),
            compiler_params=pltpu.CompilerParams(
                dimension_semantics=("parallel", "parallel", "parallel"),
                vmem_limit_bytes=vmem_limit,
            ),
        )

    args = (y, y, w_flat, b_pad)
    try:
        out_pad = build(True)(*args)    # single-buffered resident weight block
    except Exception:
        out_pad = build(False)(*args)   # fallback: default double buffering

    # Drop window padding and hidden padding.
    return out_pad[:, :W, :hidden]


if __name__ == "__main__":
    # Small shapes consistent with the module: (B, C, T) = (2, 4, 16),
    # window_len=8, step=4 -> W=3 windows; hidden=32.
    B, C, T = 2, 4, 16
    window_len, step, hidden = 8, 4, 32

    key = jax.random.PRNGKey(0)
    kx, kw, kb = jax.random.split(key, 3)
    x = jax.random.normal(kx, (B, C, T), dtype=jnp.float32)
    weight = 0.1 * jax.random.normal(kw, (C * window_len, hidden), dtype=jnp.float32)
    bias = 0.1 * jax.random.normal(kb, (1, hidden), dtype=jnp.float32)

    out = windowed_apply(x, weight, bias, window_len=window_len, step=step)
    out = jax.block_until_ready(out)

    # Pure-JAX reference for the same forward pass (unfold + Flatten + Linear +
    # ReLU), with matmul operands rounded to bf16 to match kernel precision.
    W = (T - window_len) // step + 1
    starts = jnp.arange(W) * step
    idx = starts[:, None] + jnp.arange(window_len)[None, :]
    xw = jnp.transpose(x[:, :, idx], (0, 2, 1, 3)).reshape(B * W, C * window_len)
    xw_b = xw.astype(jnp.bfloat16).astype(jnp.float32)
    w_b = weight.astype(jnp.bfloat16).astype(jnp.float32)
    ref = jnp.maximum(xw_b @ w_b + bias, 0.0).reshape(B, W, hidden)

    assert out.shape == (B, W, hidden), out.shape
    assert jnp.allclose(out.astype(jnp.float32), ref, atol=2e-3, rtol=2e-3), \
        "mismatch vs reference"
    print("KERNEL_OK")
</pallas_src>

<mosaic_0001>
module attributes {stable_mosaic.version = 11 : i64} {
  func.func @kernel(%arg0: i32, %arg1: i32, %arg2: i32, %arg3: memref<1x16x16xbf16, #tpu.memory_space<vmem>>, %arg4: memref<1x16x16xbf16, #tpu.memory_space<vmem>>, %arg5: memref<128x128xbf16, #tpu.memory_space<vmem>>, %arg6: memref<1x128xf32, #tpu.memory_space<vmem>>, %arg7: memref<1x16x128xf32, #tpu.memory_space<vmem>>) attributes {dimension_semantics = [#tpu.dimension_semantics<parallel>, #tpu.dimension_semantics<parallel>, #tpu.dimension_semantics<parallel>], iteration_bounds = array<i64: 1, 2, 1>, scalar_prefetch = 0 : i64, scratch_operands = 0 : i64, tpu.core_type = #tpu.core_type<tc>, window_params = [{transform_indices = @transform_0, window_bounds = array<i64: 1, 16, 16>}, {transform_indices = @transform_1, window_bounds = array<i64: 1, 16, 16>}, {pipeline_mode = #tpu.pipeline_mode<synchronous>, transform_indices = @transform_2, window_bounds = array<i64: 128, 128>}, {transform_indices = @transform_3, window_bounds = array<i64: 1, 128>}, {transform_indices = @transform_4, window_bounds = array<i64: 1, 16, 128>}]} {
    %c0 = arith.constant 0 : index
    %c0_0 = arith.constant 0 : index
    %c0_1 = arith.constant 0 : index
    %0 = vector.load %arg3[%c0, %c0_0, %c0_1] : memref<1x16x16xbf16, #tpu.memory_space<vmem>>, vector<1x16x16xbf16>
    %1 = vector.shape_cast %0 : vector<1x16x16xbf16> to vector<16x16xbf16>
    %c0_2 = arith.constant 0 : index
    %c0_3 = arith.constant 0 : index
    %c0_4 = arith.constant 0 : index
    %2 = vector.load %arg4[%c0_2, %c0_3, %c0_4] : memref<1x16x16xbf16, #tpu.memory_space<vmem>>, vector<1x16x16xbf16>
    %3 = vector.shape_cast %2 : vector<1x16x16xbf16> to vector<16x16xbf16>
    %4 = tpu.concatenate %1, %3 in 0 : vector<16x16xbf16>, vector<16x16xbf16> -> vector<32x16xbf16>
    %5 = vector.extract_strided_slice %4 {offsets = [0, 0], sizes = [16, 16], strides = [1, 1]} : vector<32x16xbf16> to vector<16x16xbf16>
    %6 = vector.extract_strided_slice %4 {offsets = [1, 0], sizes = [16, 16], strides = [1, 1]} : vector<32x16xbf16> to vector<16x16xbf16>
    %cst = arith.constant 0.000000e+00 : bf16
    %7 = vector.broadcast %cst : bf16 to vector<16x96xbf16>
    %8 = tpu.concatenate %5, %6, %7 in 1 : vector<16x16xbf16>, vector<16x16xbf16>, vector<16x96xbf16> -> vector<16x128xbf16>
    %c0_5 = arith.constant 0 : index
    %c0_6 = arith.constant 0 : index
    %9 = vector.load %arg5[%c0_5, %c0_6] : memref<128x128xbf16, #tpu.memory_space<vmem>>, vector<128x128xbf16>
    %cst_7 = arith.constant dense<0.000000e+00> : vector<16x128xf32>
    %10 = tpu.matmul %8, %9, %cst_7 {dimension_numbers = #tpu.dot_dimension_numbers<[1], [0], [0], [1], [0, 0, 1, 1], [], []>} : vector<16x128xbf16>, vector<128x128xbf16>, vector<16x128xf32> -> vector<16x128xf32>
    %c0_8 = arith.constant 0 : index
    %c0_9 = arith.constant 0 : index
    %11 = vector.load %arg6[%c0_8, %c0_9] : memref<1x128xf32, #tpu.memory_space<vmem>>, vector<1x128xf32>
    %12 = vector.broadcast %11 : vector<1x128xf32> to vector<16x128xf32>
    %13 = arith.addf %10, %12 : vector<16x128xf32>
    %cst_10 = arith.constant 0.000000e+00 : f32
    %14 = vector.broadcast %cst_10 : f32 to vector<16x128xf32>
    %15 = arith.maximumf %13, %14 : vector<16x128xf32>
    %c0_11 = arith.constant 0 : index
    %c0_12 = arith.constant 0 : index
    %c0_13 = arith.constant 0 : index
    %16 = vector.load %arg7[%c0_11, %c0_12, %c0_13] : memref<1x16x128xf32, #tpu.memory_space<vmem>>, vector<1x16x128xf32>
    %17 = vector.shape_cast %16 : vector<1x16x128xf32> to vector<16x128xf32>
    %18 = vector.shape_cast %15 : vector<16x128xf32> to vector<1x16x128xf32>
    tpu.vector_store %arg7[%c0_11, %c0_12, %c0_13], %18 {strides = array<i32>} : memref<1x16x128xf32, #tpu.memory_space<vmem>>, vector<1x16x128xf32>,
    return
  }
  func.func @transform_0(%arg0: i32, %arg1: i32, %arg2: i32) -> (i32, i32, i32) {
    %c0_i32 = arith.constant 0 : i32
    %c0_i32_0 = arith.constant 0 : i32
    return %arg1, %arg2, %c0_i32 : i32, i32, i32
  }
  func.func @transform_1(%arg0: i32, %arg1: i32, %arg2: i32) -> (i32, i32, i32) {
    %c1_i32 = arith.constant 1 : i32
    %0 = arith.addi %arg2, %c1_i32 : i32
    %c0_i32 = arith.constant 0 : i32
    %c0_i32_0 = arith.constant 0 : i32
    return %arg1, %0, %c0_i32 : i32, i32, i32
  }
  func.func @transform_2(%arg0: i32, %arg1: i32, %arg2: i32) -> (i32, i32) {
    %c0_i32 = arith.constant 0 : i32
    %c0_i32_0 = arith.constant 0 : i32
    return %c0_i32, %arg0 : i32, i32
  }
  func.func @transform_3(%arg0: i32, %arg1: i32, %arg2: i32) -> (i32, i32) {
    %c0_i32 = arith.constant 0 : i32
    %c0_i32_0 = arith.constant 0 : i32
    return %c0_i32, %arg0 : i32, i32
  }
  func.func @transform_4(%arg0: i32, %arg1: i32, %arg2: i32) -> (i32, i32, i32) {
    %c0_i32 = arith.constant 0 : i32
    return %arg1, %arg2, %arg0 : i32, i32, i32
  }
}

module attributes {stable_mosaic.version = 11 : i64} {
  func.func @kernel(%arg0: i32, %arg1: i32, %arg2: i32, %arg3: memref<1x16x16xbf16, #tpu.memory_space<vmem>>, %arg4: memref<1x16x16xbf16, #tpu.memory_space<vmem>>, %arg5: memref<128x128xbf16, #tpu.memory_space<vmem>>, %arg6: memref<1x128xf32, #tpu.memory_space<vmem>>, %arg7: memref<1x16x128xf32, #tpu.memory_space<vmem>>) attributes {dimension_semantics = [#tpu.dimension_semantics<parallel>, #tpu.dimension_semantics<parallel>, #tpu.dimension_semantics<parallel>], iteration_bounds = array<i64: 1, 2, 1>, scalar_prefetch = 0 : i64, scratch_operands = 0 : i64, tpu.core_type = #tpu.core_type<tc>, window_params = [{transform_indices = @transform_0, window_bounds = array<i64: 1, 16, 16>}, {transform_indices = @transform_1, window_bounds = array<i64: 1, 16, 16>}, {transform_indices = @transform_2, window_bounds = array<i64: 128, 128>}, {transform_indices = @transform_3, window_bounds = array<i64: 1, 128>}, {transform_indices = @transform_4, window_bounds = array<i64: 1, 16, 128>}]} {
    %c0 = arith.constant 0 : index
    %c0_0 = arith.constant 0 : index
    %c0_1 = arith.constant 0 : index
    %0 = vector.load %arg3[%c0, %c0_0, %c0_1] : memref<1x16x16xbf16, #tpu.memory_space<vmem>>, vector<1x16x16xbf16>
    %1 = vector.shape_cast %0 : vector<1x16x16xbf16> to vector<16x16xbf16>
    %c0_2 = arith.constant 0 : index
    %c0_3 = arith.constant 0 : index
    %c0_4 = arith.constant 0 : index
    %2 = vector.load %arg4[%c0_2, %c0_3, %c0_4] : memref<1x16x16xbf16, #tpu.memory_space<vmem>>, vector<1x16x16xbf16>
    %3 = vector.shape_cast %2 : vector<1x16x16xbf16> to vector<16x16xbf16>
    %4 = tpu.concatenate %1, %3 in 0 : vector<16x16xbf16>, vector<16x16xbf16> -> vector<32x16xbf16>
    %5 = vector.extract_strided_slice %4 {offsets = [0, 0], sizes = [16, 16], strides = [1, 1]} : vector<32x16xbf16> to vector<16x16xbf16>
    %6 = vector.extract_strided_slice %4 {offsets = [1, 0], sizes = [16, 16], strides = [1, 1]} : vector<32x16xbf16> to vector<16x16xbf16>
    %cst = arith.constant 0.000000e+00 : bf16
    %7 = vector.broadcast %cst : bf16 to vector<16x96xbf16>
    %8 = tpu.concatenate %5, %6, %7 in 1 : vector<16x16xbf16>, vector<16x16xbf16>, vector<16x96xbf16> -> vector<16x128xbf16>
    %c0_5 = arith.constant 0 : index
    %c0_6 = arith.constant 0 : index
    %9 = vector.load %arg5[%c0_5, %c0_6] : memref<128x128xbf16, #tpu.memory_space<vmem>>, vector<128x128xbf16>
    %cst_7 = arith.constant dense<0.000000e+00> : vector<16x128xf32>
    %10 = tpu.matmul %8, %9, %cst_7 {dimension_numbers = #tpu.dot_dimension_numbers<[1], [0], [0], [1], [0, 0, 1, 1], [], []>} : vector<16x128xbf16>, vector<128x128xbf16>, vector<16x128xf32> -> vector<16x128xf32>
    %c0_8 = arith.constant 0 : index
    %c0_9 = arith.constant 0 : index
    %11 = vector.load %arg6[%c0_8, %c0_9] : memref<1x128xf32, #tpu.memory_space<vmem>>, vector<1x128xf32>
    %12 = vector.broadcast %11 : vector<1x128xf32> to vector<16x128xf32>
    %13 = arith.addf %10, %12 : vector<16x128xf32>
    %cst_10 = arith.constant 0.000000e+00 : f32
    %14 = vector.broadcast %cst_10 : f32 to vector<16x128xf32>
    %15 = arith.maximumf %13, %14 : vector<16x128xf32>
    %c0_11 = arith.constant 0 : index
    %c0_12 = arith.constant 0 : index
    %c0_13 = arith.constant 0 : index
    %16 = vector.load %arg7[%c0_11, %c0_12, %c0_13] : memref<1x16x128xf32, #tpu.memory_space<vmem>>, vector<1x16x128xf32>
    %17 = vector.shape_cast %16 : vector<1x16x128xf32> to vector<16x128xf32>
    %18 = vector.shape_cast %15 : vector<16x128xf32> to vector<1x16x128xf32>
    tpu.vector_store %arg7[%c0_11, %c0_12, %c0_13], %18 {strides = array<i32>} : memref<1x16x128xf32, #tpu.memory_space<vmem>>, vector<1x16x128xf32>,
    return
  }
  func.func @transform_0(%arg0: i32, %arg1: i32, %arg2: i32) -> (i32, i32, i32) {
    %c0_i32 = arith.constant 0 : i32
    %c0_i32_0 = arith.constant 0 : i32
    return %arg1, %arg2, %c0_i32 : i32, i32, i32
  }
  func.func @transform_1(%arg0: i32, %arg1: i32, %arg2: i32) -> (i32, i32, i32) {
    %c1_i32 = arith.constant 1 : i32
    %0 = arith.addi %arg2, %c1_i32 : i32
    %c0_i32 = arith.constant 0 : i32
    %c0_i32_0 = arith.constant 0 : i32
    return %arg1, %0, %c0_i32 : i32, i32, i32
  }
  func.func @transform_2(%arg0: i32, %arg1: i32, %arg2: i32) -> (i32, i32) {
    %c0_i32 = arith.constant 0 : i32
    %c0_i32_0 = arith.constant 0 : i32
    return %c0_i32, %arg0 : i32, i32
  }
  func.func @transform_3(%arg0: i32, %arg1: i32, %arg2: i32) -> (i32, i32) {
    %c0_i32 = arith.constant 0 : i32
    %c0_i32_0 = arith.constant 0 : i32
    return %c0_i32, %arg0 : i32, i32
  }
  func.func @transform_4(%arg0: i32, %arg1: i32, %arg2: i32) -> (i32, i32, i32) {
    %c0_i32 = arith.constant 0 : i32
    return %arg1, %arg2, %arg0 : i32, i32, i32
  }
}

</mosaic_0001>

<llo_original>
// kernel: tpu_custom_call.1
$region0: #{tpu_custom_call.1}
  #allocation0 [shape = 'u32[]', space=smem, size = 0x4, offset = 0x4, fixed_abs, tag = 'smem constant byte address 0x4 - core index']
  #allocation1 [shape = 'u32[144,128]{1,0:T(1,128)}', space=vmem, size = 0x12000, scoped, tag = 'internal scratch']
  %s0 = inlined_call_operand.vmem [shape: bf16[2,32,16], index: 0, kind: input, shape index: {}]
  %s1 = inlined_call_operand.vmem [shape: bf16[2,32,16], index: 1, kind: input, shape index: {}]
  %s2 = inlined_call_operand.vmem [shape: bf16[128,128], index: 2, kind: input, shape index: {}]
  %s3 = inlined_call_operand.vmem [shape: f32[1,128], index: 3, kind: input, shape index: {}]
  %s4 = inlined_call_operand.hbm [shape: f32[2,16,128], index: 4, kind: output, shape index: {}]
  %s5 = sld [smem:[#allocation0]]
  $region49: #{tpu_custom_call.1} parent=0
    _
  %s7 = ssub.s32 1, %s5
  %s8 = scalar_select 0, %s7, %s5
  $region1: #{tpu_custom_call.1} parent=0
    #allocation2 [shape = 'u8[16384]{0}', space=vmem, size = 0x4000, scoped, tag = 'output window, operand 0']
    #allocation3 [shape = 's32[2]{0}', space=sflag, size = 0x8, scoped, tag = 'scoped memory for tpu_custom_call.1']
    %9 = vsyncpa [#allocation3], 0
    %s10 = scalar_lea.sflag [#allocation3], 1
    %11 = vsyncpa %s10, 0
    loop: start=0, step=1, limit=4
    $region2: #{tpu_custom_call.1} parent=1 // loop_pre_header
      _
    $region3: #{tpu_custom_call.1} parent=1 // loop_header
      %s13 = sphi 0, %s17
      %p14 = scmp.ge.s32.totalorder %s13, 4
      %s20 = sphi 0, %s39
      %s21 = sphi 0, %s35
      %s22 = sphi 0, %s31
      %s23 = sphi 0, %s20
      %s24 = sphi 0, %s21
      %s25 = sphi 0, %s22
      %s26 = sphi 0, %s23
      %s27 = sphi 0, %s24
      %s28 = sphi 0, %s25
      %s44 = sphi 0, %s46
      %s47 = sphi 0, %s44
      %s48 = sphi 0, %s47
      %s64 = sphi 0, %s48
      %s74 = sphi 0, %s76
      %s77 = sphi 0, %s74
      %s78 = sphi 0, %s77
      %s94 = sphi 0, %s78
      %s100 = sphi 0, %s102
      %s103 = sphi 0, %s100
      %s104 = sphi 0, %s103
      %s120 = sphi 0, %s104
      %s126 = sphi 0, %s128
      %s129 = sphi 0, %s126
      %s130 = sphi 0, %s129
      %s146 = sphi 0, %s130
      %s156 = sphi 0, %s158
      %s159 = sphi 0, %s156
      %s160 = sphi 0, %s159
      %s176 = sphi 0, %s160
    $region4: #{tpu_custom_call.1} parent=1 // loop_header_branch
      %16 = sbr.rel (%p14) target = $region8
    $region5: #{tpu_custom_call.1} parent=1 // loop_body
      %s18 = ssub.s32 %s13, 1
      %s19 = ssub.s32 %s13, 2
      %s29 = sadd.s32 1, %s22
      %p30 = scmp.ge.s32.totalorder %s29, 1
      %s31 = scalar_select %p30, 0, %s29
      %s32 = sadd.s32 1, %s21
      %s33 = scalar_select %p30, %s32, %s21
      %p34 = scmp.ge.s32.totalorder %s33, 2
      %s35 = scalar_select %p34, 0, %s33
      %s36 = sadd.s32 1, %s20
      %s37 = scalar_select %p34, %s36, %s20
      %p38 = scmp.ge.s32.totalorder %s37, 1
      %s39 = scalar_select %p38, 0, %s37
      %s40 = ssub.s32 %s21, %s35
      %s41 = ssub.s32 %s22, %s31
      %s42 = sor.u32 %s40, %s41
      %p43 = scmp.eq.s32.totalorder %s42, 0
      %s45 = sadd.s32 %s44, 1
      %s46 = scalar_select %p43, %s44, %s45
      %p49 = pneg %p43
      %p50 = scmp.eq.s32.totalorder %s13, 1
      %p51 = por %p49, %p50
      %p52 = scmp.ne.s32.totalorder %s44, %s47
      %p53 = scmp.eq.s32.totalorder %s13, 0
      %p54 = por %p52, %p53
      %p55 = scmp.ne.s32.totalorder %s44, %s47
      %p56 = scmp.eq.s32.totalorder %s18, 1
      %p57 = por %p55, %p56
      %p58 = scmp.ne.s32.totalorder %s47, %s48
      %p59 = scmp.eq.s32.totalorder %s18, 0
      %p60 = por %p58, %p59
      %p61 = scmp.ne.s32.totalorder %s47, %s48
      %p62 = scmp.eq.s32.totalorder %s19, 1
      %p63 = por %p61, %p62
      %p65 = scmp.ne.s32.totalorder %s48, %s64
      %p66 = scmp.eq.s32.totalorder %s19, 0
      %p67 = por %p65, %p66
      %s68 = sadd.s32 %s22, 1
      %s69 = sadd.s32 %s31, 1
      %s70 = ssub.s32 %s21, %s35
      %s71 = ssub.s32 %s68, %s69
      %s72 = sor.u32 %s70, %s71
      %p73 = scmp.eq.s32.totalorder %s72, 0
      %s75 = sadd.s32 %s74, 1
      %s76 = scalar_select %p73, %s74, %s75
      %p79 = pneg %p73
      %p80 = scmp.eq.s32.totalorder %s13, 1
      %p81 = por %p79, %p80
      %p82 = scmp.ne.s32.totalorder %s74, %s77
      %p83 = scmp.eq.s32.totalorder %s13, 0
      %p84 = por %p82, %p83
      %p85 = scmp.ne.s32.totalorder %s74, %s77
      %p86 = scmp.eq.s32.totalorder %s18, 1
      %p87 = por %p85, %p86
      %p88 = scmp.ne.s32.totalorder %s77, %s78
      %p89 = scmp.eq.s32.totalorder %s18, 0
      %p90 = por %p88, %p89
      %p91 = scmp.ne.s32.totalorder %s77, %s78
      %p92 = scmp.eq.s32.totalorder %s19, 1
      %p93 = por %p91, %p92
      %p95 = scmp.ne.s32.totalorder %s78, %s94
      %p96 = scmp.eq.s32.totalorder %s19, 0
      %p97 = por %p95, %p96
      %s98 = ssub.s32 %s20, %s39
      %p99 = scmp.eq.s32.totalorder %s98, 0
      %s101 = sadd.s32 %s100, 1
      %s102 = scalar_select %p99, %s100, %s101
      %p105 = pneg %p99
      %p106 = scmp.eq.s32.totalorder %s13, 1
      %p107 = por %p105, %p106
      %p108 = scmp.ne.s32.totalorder %s100, %s103
      %p109 = scmp.eq.s32.totalorder %s13, 0
      %p110 = por %p108, %p109
      %p111 = scmp.ne.s32.totalorder %s100, %s103
      %p112 = scmp.eq.s32.totalorder %s18, 1
      %p113 = por %p111, %p112
      %p114 = scmp.ne.s32.totalorder %s103, %s104
      %p115 = scmp.eq.s32.totalorder %s18, 0
      %p116 = por %p114, %p115
      %p117 = scmp.ne.s32.totalorder %s103, %s104
      %p118 = scmp.eq.s32.totalorder %s19, 1
      %p119 = por %p117, %p118
      %p121 = scmp.ne.s32.totalorder %s104, %s120
      %p122 = scmp.eq.s32.totalorder %s19, 0
      %p123 = por %p121, %p122
      %s124 = ssub.s32 %s20, %s39
      %p125 = scmp.eq.s32.totalorder %s124, 0
      %s127 = sadd.s32 %s126, 1
      %s128 = scalar_select %p125, %s126, %s127
      %p131 = pneg %p125
      %p132 = scmp.eq.s32.totalorder %s13, 1
      %p133 = por %p131, %p132
      %p134 = scmp.ne.s32.totalorder %s126, %s129
      %p135 = scmp.eq.s32.totalorder %s13, 0
      %p136 = por %p134, %p135
      %p137 = scmp.ne.s32.totalorder %s126, %s129
      %p138 = scmp.eq.s32.totalorder %s18, 1
      %p139 = por %p137, %p138
      %p140 = scmp.ne.s32.totalorder %s129, %s130
      %p141 = scmp.eq.s32.totalorder %s18, 0
      %p142 = por %p140, %p141
      %p143 = scmp.ne.s32.totalorder %s129, %s130
      %p144 = scmp.eq.s32.totalorder %s19, 1
      %p145 = por %p143, %p144
      %p147 = scmp.ne.s32.totalorder %s130, %s146
      %p148 = scmp.eq.s32.totalorder %s19, 0
      %p149 = por %p147, %p148
      %s150 = ssub.s32 %s21, %s35
      %s151 = ssub.s32 %s22, %s31
      %s152 = sor.u32 %s150, %s151
      %s153 = ssub.s32 %s20, %s39
      %s154 = sor.u32 %s152, %s153
      %p155 = scmp.eq.s32.totalorder %s154, 0
      %s157 = sadd.s32 %s156, 1
      %s158 = scalar_select %p155, %s156, %s157
      %p161 = pneg %p155
      %p162 = scmp.eq.s32.totalorder %s13, 1
      %p163 = por %p161, %p162
      %p164 = scmp.ne.s32.totalorder %s156, %s159
      %p165 = scmp.eq.s32.totalorder %s13, 0
      %p166 = por %p164, %p165
      %p167 = scmp.ne.s32.totalorder %s156, %s159
      %p168 = scmp.eq.s32.totalorder %s18, 1
      %p169 = por %p167, %p168
      %p170 = scmp.ne.s32.totalorder %s159, %s160
      %p171 = scmp.eq.s32.totalorder %s18, 0
      %p172 = por %p170, %p171
      %p173 = scmp.ne.s32.totalorder %s159, %s160
      %p174 = scmp.eq.s32.totalorder %s19, 1
      %p175 = por %p173, %p174
      %p177 = scmp.ne.s32.totalorder %s160, %s176
      %p178 = scmp.eq.s32.totalorder %s19, 0
      %p179 = por %p177, %p178
      %p180 = scmp.le.s32.totalorder 1, %s13
      %p181 = scmp.lt.s32.totalorder %s13, 3
      %p182 = pnand %p180, %p181
      %p183 = pneg %p182
      // Predicated region
      $region9: #{tpu_custom_call.1} parent=5 // pred_check
        _
      $region10: #{tpu_custom_call.1} parent=5 // pred_check_branch
        %185 = sbr.rel (%p182) target = $region12
      $region11: #{tpu_custom_call.1} parent=5 // pred_region
        %s186 = ssub.s32 %s13, 1
        // Predicated region
        $region13: #{tpu_custom_call.1} parent=11 // pred_check
          %p187 = pneg %p116
        $region14: #{tpu_custom_call.1} parent=11 // pred_check_branch
          %189 = sbr.rel (%p187) target = $region16
        $region15: #{tpu_custom_call.1} parent=11 // pred_region
          %p190 = scmp.lt.s32.totalorder %s23, 0
          %s191 = scalar_select %p190, %s23, 0
          %s192 = smul.addr %s191, 4
          %s193 = scalar_lea.vmem %s2, %s192
        $region16: #{tpu_custom_call.1} parent=11 // pred_fallthru
          _
        // Predicated region
        $region17: #{tpu_custom_call.1} parent=11 // pred_check
          %p194 = pneg %p142
        $region18: #{tpu_custom_call.1} parent=11 // pred_check_branch
          %196 = sbr.rel (%p194) target = $region20
        $region19: #{tpu_custom_call.1} parent=11 // pred_region
          %p197 = scmp.lt.s32.totalorder %s23, 0
          %s198 = scalar_select %p197, %s23, 0
          %s199 = scalar_lea.vmem %s3, %s198
        $region20: #{tpu_custom_call.1} parent=11 // pred_fallthru
          _
      $region12: #{tpu_custom_call.1} parent=5 // pred_fallthru
        _
      %p200 = scmp.lt.s32.totalorder %s13, 2
      // Predicated region
      $region21: #{tpu_custom_call.1} parent=5 // pred_check
        %p201 = pneg %p200
      $region22: #{tpu_custom_call.1} parent=5 // pred_check_branch
        %203 = sbr.rel (%p201) target = $region24
      $region23: #{tpu_custom_call.1} parent=5 // pred_region
        // Predicated region
        $region25: #{tpu_custom_call.1} parent=23 // pred_check
          %p204 = pneg %p54
        $region26: #{tpu_custom_call.1} parent=23 // pred_check_branch
          %206 = sbr.rel (%p204) target = $region28
        $region27: #{tpu_custom_call.1} parent=23 // pred_region
          %s207 = smul.u32 2, %s22
          %p208 = scmp.lt.s32.totalorder %s21, 1
          %s209 = scalar_select %p208, %s21, 1
          %p210 = scmp.lt.s32.totalorder %s207, 3
          %s211 = scalar_select %p210, %s207, 3
          %s212 = smul.addr %s209, 4
          %s213 = sadd.s32 %s211, %s212
          %s214 = smul.addr %s213, 4
          %s215 = scalar_lea.vmem %s0, %s214
          %s216 = smul.u32 2, %s22
        $region28: #{tpu_custom_call.1} parent=23 // pred_fallthru
          _
        // Predicated region
        $region29: #{tpu_custom_call.1} parent=23 // pred_check
          %p217 = pneg %p84
        $region30: #{tpu_custom_call.1} parent=23 // pred_check_branch
          %219 = sbr.rel (%p217) target = $region32
        $region31: #{tpu_custom_call.1} parent=23 // pred_region
          %s220 = sadd.s32 %s22, 1
          %s221 = smul.u32 2, %s220
          %p222 = scmp.lt.s32.totalorder %s21, 1
          %s223 = scalar_select %p222, %s21, 1
          %p224 = scmp.lt.s32.totalorder %s221, 3
          %s225 = scalar_select %p224, %s221, 3
          %s226 = smul.addr %s223, 4
          %s227 = sadd.s32 %s225, %s226
          %s228 = smul.addr %s227, 4
          %s229 = scalar_lea.vmem %s1, %s228
          %s230 = sadd.s32 %s22, 1
          %s231 = smul.u32 2, %s230
        $region32: #{tpu_custom_call.1} parent=23 // pred_fallthru
          _
      $region24: #{tpu_custom_call.1} parent=5 // pred_fallthru
        _
      %p232 = scmp.le.s32.totalorder 1, %s13
      %p233 = scmp.lt.s32.totalorder %s13, 3
      %p234 = pnand %p232, %p233
      %p235 = pneg %p234
      // Predicated region
      $region33: #{tpu_custom_call.1} parent=5 // pred_check
        _
      $region34: #{tpu_custom_call.1} parent=5 // pred_check_branch
        %237 = sbr.rel (%p234) target = $region36
      $region35: #{tpu_custom_call.1} parent=5 // pred_region
        %s238 = ssub.s32 %s13, 1
        %s239 = smul.u32 2, %s25
        %p240 = scmp.lt.s32.totalorder %s24, 1
        %s241 = scalar_select %p240, %s24, 1
        %p242 = scmp.lt.s32.totalorder %s239, 3
        %s243 = scalar_select %p242, %s239, 3
        %s244 = smul.addr %s241, 4
        %s245 = sadd.s32 %s243, %s244
        %s246 = smul.addr %s245, 4
        %s247 = scalar_lea.vmem %s0, %s246
        %p248 = pneg %p60
        %p249 = pneg %p57
        %s250 = sadd.s32 %s25, 1
        %s251 = smul.u32 2, %s250
        %p252 = scmp.lt.s32.totalorder %s24, 1
        %s253 = scalar_select %p252, %s24, 1
        %p254 = scmp.lt.s32.totalorder %s251, 3
        %s255 = scalar_select %p254, %s251, 3
        %s256 = smul.addr %s253, 4
        %s257 = sadd.s32 %s255, %s256
        %s258 = smul.addr %s257, 4
        %s259 = scalar_lea.vmem %s1, %s258
        %p260 = pneg %p90
        %p261 = pneg %p87
        %p262 = scmp.lt.s32.totalorder %s23, 0
        %s263 = scalar_select %p262, %s23, 0
        %s264 = smul.addr %s263, 4
        %s265 = scalar_lea.vmem %s2, %s264
        %p266 = pneg %p116
        %p267 = pneg %p113
        %p268 = scmp.lt.s32.totalorder %s23, 0
        %s269 = scalar_select %p268, %s23, 0
        %s270 = scalar_lea.vmem %s3, %s269
        %p271 = pneg %p142
        %p272 = pneg %p139
        %p273 = pneg %p172
        %p274 = pneg %p169
        %s275 = sand.u32 %s159, 1
        %s276 = scalar_lea.sflag [#allocation3], %s275
        %s277 = sand.u32 %s159, 1
        %s278 = smul.addr %s277, 16
        %s279 = scalar_lea.vmem [#allocation2], %s278
        %s280 = smul.u32 2, %s25
        %p281 = scmp.lt.s32.totalorder %s24, 1
        %s282 = scalar_select %p281, %s24, 1
        %p283 = scmp.lt.s32.totalorder %s280, 3
        %s284 = scalar_select %p283, %s280, 3
        %s285 = smul.addr %s282, 4
        %s286 = sadd.s32 %s284, %s285
        %s287 = smul.addr %s286, 4
        %s288 = scalar_lea.vmem %s0, %s287
        %s289 = smul.u32 2, %s25
        %s290 = sadd.s32 %s25, 1
        %s291 = smul.u32 2, %s290
        %p292 = scmp.lt.s32.totalorder %s24, 1
        %s293 = scalar_select %p292, %s24, 1
        %p294 = scmp.lt.s32.totalorder %s291, 3
        %s295 = scalar_select %p294, %s291, 3
        %s296 = smul.addr %s293, 4
        %s297 = sadd.s32 %s295, %s296
        %s298 = smul.addr %s297, 4
        %s299 = scalar_lea.vmem %s1, %s298
        %s300 = sadd.s32 %s25, 1
        %s301 = smul.u32 2, %s300
        %p302 = scmp.lt.s32.totalorder %s23, 0
        %s303 = scalar_select %p302, %s23, 0
        %s304 = smul.addr %s303, 4
        %s305 = scalar_lea.vmem %s2, %s304
        %p306 = scmp.lt.s32.totalorder %s23, 0
        %s307 = scalar_select %p306, %s23, 0
        %s308 = scalar_lea.vmem %s3, %s307
        %s309 = smul.u32 2, %s25
        %v311 = vld [vmem:[%s288] sm:$0xf]
        %v312 = vld [vmem:[%s288 + $0x4] sm:$0xf]
        %v313 = vld [vmem:[%s299] sm:$0xf]
        %v314 = vld [vmem:[%s299 + $0x4] sm:$0xf]
        %v317 = vunpack.c.l.b16 %v311
        %v318 = vunpack.c.l.b16 %v312
        %v319 = vpack.c.b16 %v318, %v317
        %v322 = vunpack.c.l.b16 %v313
        %v323 = vunpack.c.l.b16 %v314
        %v324 = vpack.c.b16 %v323, %v322
        %vm325 = vsmask.f32 7424
        %v327 = vshrl.u32 %v319, 16
        %v329 = vshll.u32 %v319, 16
        %v331 = vrot.slane %v329, 1
        %v332 = vor.u32 %v327, %v331
        %v334 = vshll.u32 %v324, 16
        %v336 = vrot.slane %v334, 1
        %v337 = vsel %vm325, %v332, %v336
        %338 = vrot.lane.b32.xlu0 %v337, 16
        %v339 = vpop.permute.xlu0 %338
        %vm340 = vcmask 130048
        %v342 = vsel %vm340, %v319, %v339
        %vm343 = vcmask 261120
        %v345 = vsel %vm343, %v342, 0
        %v347 = vld [vmem:[%s305] sm:$0xf]
        %v348 = vld [vmem:[%s305 + $0x4] sm:$0xf]
        %v349 = vld [vmem:[%s305 + $0x8] sm:$0xf]
        %v350 = vld [vmem:[%s305 + $0xc] sm:$0xf]
        %v351 = vld [vmem:[%s305 + $0x10] sm:$0xf]
        %v352 = vld [vmem:[%s305 + $0x14] sm:$0xf]
        %v353 = vld [vmem:[%s305 + $0x18] sm:$0xf]
        %v354 = vld [vmem:[%s305 + $0x1c] sm:$0xf]
        %v355 = vld [vmem:[%s305 + $0x20] sm:$0xf]
        %v356 = vld [vmem:[%s305 + $0x24] sm:$0xf]
        %v357 = vld [vmem:[%s305 + $0x28] sm:$0xf]
        %v358 = vld [vmem:[%s305 + $0x2c] sm:$0xf]
        %v359 = vld [vmem:[%s305 + $0x30] sm:$0xf]
        %v360 = vld [vmem:[%s305 + $0x34] sm:$0xf]
        %v361 = vld [vmem:[%s305 + $0x38] sm:$0xf]
        %v362 = vld [vmem:[%s305 + $0x3c] sm:$0xf]
        %v363 = vld [vmem:[%s308] sm:$0x1]
        %v365 = vlaneseq
        %v366 = vshrl.u32 %v365, 7
        %v367 = vsub.s32 0, %v366
        %v368 = vrot.slane %v363, %v367
        %v386 = vunpack.c.l.b16 %v347
        %v387 = vunpack.c.l.b16 %v348
        %v388 = vunpack.c.l.b16 %v349
        %v389 = vunpack.c.l.b16 %v350
        %v390 = vunpack.c.l.b16 %v351
        %v391 = vunpack.c.l.b16 %v352
        %v392 = vunpack.c.l.b16 %v353
        %v393 = vunpack.c.l.b16 %v354
        %v394 = vunpack.c.l.b16 %v355
        %v395 = vunpack.c.l.b16 %v356
        %v396 = vunpack.c.l.b16 %v357
        %v397 = vunpack.c.l.b16 %v358
        %v398 = vunpack.c.l.b16 %v359
        %v399 = vunpack.c.l.b16 %v360
        %v400 = vunpack.c.l.b16 %v361
        %v401 = vunpack.c.l.b16 %v362
        %v402 = vpack.c.b16 %v387, %v386
        %v403 = vpack.c.b16 %v389, %v388
        %v404 = vpack.c.b16 %v391, %v390
        %v405 = vpack.c.b16 %v393, %v392
        %v406 = vpack.c.b16 %v395, %v394
        %v407 = vpack.c.b16 %v397, %v396
        %v408 = vpack.c.b16 %v399, %v398
        %v409 = vpack.c.b16 %v401, %v400
        %418 = vmatprep.subr.bf16.mxu0 0
        %419 = vmatpush1.bf16.msra.mxu0 %v409
        %420 = vmatprep.subr.bf16.mxu0 0
        %421 = vmatpush1.bf16.msra.mxu0 %v408
        %422 = vmatprep.subr.bf16.mxu0 0
        %423 = vmatpush1.bf16.msra.mxu0 %v407
        %424 = vmatprep.subr.bf16.mxu0 0
        %425 = vmatpush1.bf16.msra.mxu0 %v406
        %426 = vmatprep.subr.bf16.mxu0 0
        %427 = vmatpush1.bf16.msra.mxu0 %v405
        %428 = vmatprep.subr.bf16.mxu0 0
        %429 = vmatpush1.bf16.msra.mxu0 %v404
        %430 = vmatprep.subr.bf16.mxu0 0
        %431 = vmatpush1.bf16.msra.mxu0 %v403
        %432 = vmatprep.subr.bf16.mxu0 0
        %433 = vmatpush1.bf16.msra.mxu0 %v402
        %434 = vmatprep.subr.bf16.mxu0 0
        %435 = vmatpush2.bf16.msra.mxu0 0
        %436 = vmatprep.subr.bf16.mxu0 0
        %437 = vmatpush2.bf16.msra.mxu0 0
        %438 = vmatprep.subr.bf16.mxu0 0
        %439 = vmatpush2.bf16.msra.mxu0 0
        %440 = vmatprep.subr.bf16.mxu0 0
        %441 = vmatpush2.bf16.msra.mxu0 0
        %442 = vmatprep.subr.bf16.mxu0 0
        %443 = vmatpush2.bf16.msra.mxu0 0
        %444 = vmatprep.subr.bf16.mxu0 0
        %445 = vmatpush2.bf16.msra.mxu0 0
        %446 = vmatprep.subr.bf16.mxu0 0
        %447 = vmatpush2.bf16.msra.mxu0 0
        %448 = vmatprep.subr.bf16.mxu0 0
        %449 = vmatpush2.bf16.msra.mxu0 0
        %450 = vmatprep.mubr.bf16.mxu0 0
        %451 = vmatmul.mubr.bf16.gmra.mxu0 %v345
        %v452 = vpop.f32.mrf.mxu0
        %v453 = vadd.f32 %v368, %v452
        %v454 = vpop.f32.mrf.mxu0
        %v455 = vpop.f32.mrf.mxu0
        %v456 = vadd.f32 %v368, %v455
        %v457 = vpop.f32.mrf.mxu0
        %458 = vdwg.mxu0
        %v459 = vmax.f32 %v453, 0.0
        %v460 = vmax.f32 %v456, 0.0
        %461 = vst [vmem:[%s279] sm:$0xff] %v459
        %462 = vst [vmem:[%s279 + $0x8] sm:$0xff] %v460
        %s463 = sand.u32 %s159, 1
        %s464 = scalar_lea.sflag [#allocation3], %s463
        %s465 = sand.u32 %s159, 1
        %s466 = smul.addr %s465, 16
        %s467 = scalar_lea.vmem [#allocation2], %s466
        // Predicated region
        $region37: #{tpu_custom_call.1} parent=35 // pred_check
          %p468 = pneg %p169
        $region38: #{tpu_custom_call.1} parent=35 // pred_check_branch
          %470 = sbr.rel (%p468) target = $region40
        $region39: #{tpu_custom_call.1} parent=35 // pred_region
          %s471 = smul.u32 2, %s25
          %s473 = ssub.s32 256, 256
          %474 = vsyncadd %s464, %s473
          %s475 = sadd.s32 %s23, %s471
          %s476 = smul.addr %s24, 2
          %s477 = sadd.s32 %s475, %s476
          %s478 = smul.addr %s477, 128
          %s479 = scalar_lea.hbm %s4, %s478
          %s480 = sshll.u32 %s467, 4
          %s481 = int_to_ptr.vmem [resolvable:$true] %s480
          %486 = dma.vmem_to_hbm [thread:$0]  %s481, 256, %s479, %s464, 128, 128, 8
        $region40: #{tpu_custom_call.1} parent=35 // pred_fallthru
          _
      $region36: #{tpu_custom_call.1} parent=5 // pred_fallthru
        _
      %p487 = scmp.le.s32.totalorder 2, %s13
      // Predicated region
      $region41: #{tpu_custom_call.1} parent=5 // pred_check
        %p488 = pneg %p487
      $region42: #{tpu_custom_call.1} parent=5 // pred_check_branch
        %490 = sbr.rel (%p488) target = $region44
      $region43: #{tpu_custom_call.1} parent=5 // pred_region
        %s491 = ssub.s32 %s13, 2
        // Predicated region
        $region45: #{tpu_custom_call.1} parent=43 // pred_check
          %p492 = pneg %p175
        $region46: #{tpu_custom_call.1} parent=43 // pred_check_branch
          %494 = sbr.rel (%p492) target = $region48
        $region47: #{tpu_custom_call.1} parent=43 // pred_region
          %s495 = sand.u32 %s160, 1
          %s496 = scalar_lea.sflag [#allocation3], %s495
          %s497 = sand.u32 %s160, 1
          %s498 = smul.addr %s497, 16
          %s499 = scalar_lea.vmem [#allocation2], %s498
          %500 = dma.done %s496, 256
        $region48: #{tpu_custom_call.1} parent=43 // pred_fallthru
          _
      $region44: #{tpu_custom_call.1} parent=5 // pred_fallthru
        _
    $region6: #{tpu_custom_call.1} parent=1 // loop_footer
      %s17 = sadd.s32 1, %s13
    $region7: #{tpu_custom_call.1} parent=1 // loop_footer_branch
      %12 = sbr.rel target = $region3
    $region8: #{tpu_custom_call.1} parent=1 // loop_exit
      _
    %501 = vsyncpa [#allocation3], 1
    %s502 = scalar_lea.sflag [#allocation3], 1
    %503 = vsyncpa %s502, 1

// kernel: tpu_custom_call.1
$region0: #{tpu_custom_call.1}
  #allocation0 [shape = 'u32[]', space=smem, size = 0x4, offset = 0x4, fixed_abs, tag = 'smem constant byte address 0x4 - core index']
  #allocation1 [shape = 'u32[144,128]{1,0:T(1,128)}', space=vmem, size = 0x12000, scoped, tag = 'internal scratch']
  %s0 = inlined_call_operand.vmem [shape: bf16[2,32,16], index: 0, kind: input, shape index: {}]
  %s1 = inlined_call_operand.vmem [shape: bf16[2,32,16], index: 1, kind: input, shape index: {}]
  %s2 = inlined_call_operand.vmem [shape: bf16[128,128], index: 2, kind: input, shape index: {}]
  %s3 = inlined_call_operand.vmem [shape: f32[1,128], index: 3, kind: input, shape index: {}]
  %s4 = inlined_call_operand.hbm [shape: f32[2,16,128], index: 4, kind: output, shape index: {}]
  %s5 = sld [smem:[#allocation0]]
  $region49: #{tpu_custom_call.1} parent=0
    _
  %s7 = ssub.s32 1, %s5
  %s8 = scalar_select 0, %s7, %s5
  $region1: #{tpu_custom_call.1} parent=0
    #allocation2 [shape = 'u8[16384]{0}', space=vmem, size = 0x4000, scoped, tag = 'output window, operand 0']
    #allocation3 [shape = 's32[2]{0}', space=sflag, size = 0x8, scoped, tag = 'scoped memory for tpu_custom_call.1']
    %9 = vsyncpa [#allocation3], 0
    %s10 = scalar_lea.sflag [#allocation3], 1
    %11 = vsyncpa %s10, 0
    loop: start=0, step=1, limit=4
    $region2: #{tpu_custom_call.1} parent=1 // loop_pre_header
      _
    $region3: #{tpu_custom_call.1} parent=1 // loop_header
      %s13 = sphi 0, %s17
      %p14 = scmp.ge.s32.totalorder %s13, 4
      %s20 = sphi 0, %s39
      %s21 = sphi 0, %s35
      %s22 = sphi 0, %s31
      %s23 = sphi 0, %s20
      %s24 = sphi 0, %s21
      %s25 = sphi 0, %s22
      %s26 = sphi 0, %s23
      %s27 = sphi 0, %s24
      %s28 = sphi 0, %s25
      %s44 = sphi 0, %s46
      %s47 = sphi 0, %s44
      %s48 = sphi 0, %s47
      %s64 = sphi 0, %s48
      %s74 = sphi 0, %s76
      %s77 = sphi 0, %s74
      %s78 = sphi 0, %s77
      %s94 = sphi 0, %s78
      %s100 = sphi 0, %s102
      %s103 = sphi 0, %s100
      %s104 = sphi 0, %s103
      %s120 = sphi 0, %s104
      %s126 = sphi 0, %s128
      %s129 = sphi 0, %s126
      %s130 = sphi 0, %s129
      %s146 = sphi 0, %s130
      %s156 = sphi 0, %s158
      %s159 = sphi 0, %s156
      %s160 = sphi 0, %s159
      %s176 = sphi 0, %s160
    $region4: #{tpu_custom_call.1} parent=1 // loop_header_branch
      %16 = sbr.rel (%p14) target = $region8
    $region5: #{tpu_custom_call.1} parent=1 // loop_body
      %s18 = ssub.s32 %s13, 1
      %s19 = ssub.s32 %s13, 2
      %s29 = sadd.s32 1, %s22
      %p30 = scmp.ge.s32.totalorder %s29, 1
      %s31 = scalar_select %p30, 0, %s29
      %s32 = sadd.s32 1, %s21
      %s33 = scalar_select %p30, %s32, %s21
      %p34 = scmp.ge.s32.totalorder %s33, 2
      %s35 = scalar_select %p34, 0, %s33
      %s36 = sadd.s32 1, %s20
      %s37 = scalar_select %p34, %s36, %s20
      %p38 = scmp.ge.s32.totalorder %s37, 1
      %s39 = scalar_select %p38, 0, %s37
      %s40 = ssub.s32 %s21, %s35
      %s41 = ssub.s32 %s22, %s31
      %s42 = sor.u32 %s40, %s41
      %p43 = scmp.eq.s32.totalorder %s42, 0
      %s45 = sadd.s32 %s44, 1
      %s46 = scalar_select %p43, %s44, %s45
      %p49 = pneg %p43
      %p50 = scmp.eq.s32.totalorder %s13, 1
      %p51 = por %p49, %p50
      %p52 = scmp.ne.s32.totalorder %s44, %s47
      %p53 = scmp.eq.s32.totalorder %s13, 0
      %p54 = por %p52, %p53
      %p55 = scmp.ne.s32.totalorder %s44, %s47
      %p56 = scmp.eq.s32.totalorder %s18, 1
      %p57 = por %p55, %p56
      %p58 = scmp.ne.s32.totalorder %s47, %s48
      %p59 = scmp.eq.s32.totalorder %s18, 0
      %p60 = por %p58, %p59
      %p61 = scmp.ne.s32.totalorder %s47, %s48
      %p62 = scmp.eq.s32.totalorder %s19, 1
      %p63 = por %p61, %p62
      %p65 = scmp.ne.s32.totalorder %s48, %s64
      %p66 = scmp.eq.s32.totalorder %s19, 0
      %p67 = por %p65, %p66
      %s68 = sadd.s32 %s22, 1
      %s69 = sadd.s32 %s31, 1
      %s70 = ssub.s32 %s21, %s35
      %s71 = ssub.s32 %s68, %s69
      %s72 = sor.u32 %s70, %s71
      %p73 = scmp.eq.s32.totalorder %s72, 0
      %s75 = sadd.s32 %s74, 1
      %s76 = scalar_select %p73, %s74, %s75
      %p79 = pneg %p73
      %p80 = scmp.eq.s32.totalorder %s13, 1
      %p81 = por %p79, %p80
      %p82 = scmp.ne.s32.totalorder %s74, %s77
      %p83 = scmp.eq.s32.totalorder %s13, 0
      %p84 = por %p82, %p83
      %p85 = scmp.ne.s32.totalorder %s74, %s77
      %p86 = scmp.eq.s32.totalorder %s18, 1
      %p87 = por %p85, %p86
      %p88 = scmp.ne.s32.totalorder %s77, %s78
      %p89 = scmp.eq.s32.totalorder %s18, 0
      %p90 = por %p88, %p89
      %p91 = scmp.ne.s32.totalorder %s77, %s78
      %p92 = scmp.eq.s32.totalorder %s19, 1
      %p93 = por %p91, %p92
      %p95 = scmp.ne.s32.totalorder %s78, %s94
      %p96 = scmp.eq.s32.totalorder %s19, 0
      %p97 = por %p95, %p96
      %s98 = ssub.s32 %s20, %s39
      %p99 = scmp.eq.s32.totalorder %s98, 0
      %s101 = sadd.s32 %s100, 1
      %s102 = scalar_select %p99, %s100, %s101
      %p105 = pneg %p99
      %p106 = scmp.eq.s32.totalorder %s13, 1
      %p107 = por %p105, %p106
      %p108 = scmp.ne.s32.totalorder %s100, %s103
      %p109 = scmp.eq.s32.totalorder %s13, 0
      %p110 = por %p108, %p109
      %p111 = scmp.ne.s32.totalorder %s100, %s103
      %p112 = scmp.eq.s32.totalorder %s18, 1
      %p113 = por %p111, %p112
      %p114 = scmp.ne.s32.totalorder %s103, %s104
      %p115 = scmp.eq.s32.totalorder %s18, 0
      %p116 = por %p114, %p115
      %p117 = scmp.ne.s32.totalorder %s103, %s104
      %p118 = scmp.eq.s32.totalorder %s19, 1
      %p119 = por %p117, %p118
      %p121 = scmp.ne.s32.totalorder %s104, %s120
      %p122 = scmp.eq.s32.totalorder %s19, 0
      %p123 = por %p121, %p122
      %s124 = ssub.s32 %s20, %s39
      %p125 = scmp.eq.s32.totalorder %s124, 0
      %s127 = sadd.s32 %s126, 1
      %s128 = scalar_select %p125, %s126, %s127
      %p131 = pneg %p125
      %p132 = scmp.eq.s32.totalorder %s13, 1
      %p133 = por %p131, %p132
      %p134 = scmp.ne.s32.totalorder %s126, %s129
      %p135 = scmp.eq.s32.totalorder %s13, 0
      %p136 = por %p134, %p135
      %p137 = scmp.ne.s32.totalorder %s126, %s129
      %p138 = scmp.eq.s32.totalorder %s18, 1
      %p139 = por %p137, %p138
      %p140 = scmp.ne.s32.totalorder %s129, %s130
      %p141 = scmp.eq.s32.totalorder %s18, 0
      %p142 = por %p140, %p141
      %p143 = scmp.ne.s32.totalorder %s129, %s130
      %p144 = scmp.eq.s32.totalorder %s19, 1
      %p145 = por %p143, %p144
      %p147 = scmp.ne.s32.totalorder %s130, %s146
      %p148 = scmp.eq.s32.totalorder %s19, 0
      %p149 = por %p147, %p148
      %s150 = ssub.s32 %s21, %s35
      %s151 = ssub.s32 %s22, %s31
      %s152 = sor.u32 %s150, %s151
      %s153 = ssub.s32 %s20, %s39
      %s154 = sor.u32 %s152, %s153
      %p155 = scmp.eq.s32.totalorder %s154, 0
      %s157 = sadd.s32 %s156, 1
      %s158 = scalar_select %p155, %s156, %s157
      %p161 = pneg %p155
      %p162 = scmp.eq.s32.totalorder %s13, 1
      %p163 = por %p161, %p162
      %p164 = scmp.ne.s32.totalorder %s156, %s159
      %p165 = scmp.eq.s32.totalorder %s13, 0
      %p166 = por %p164, %p165
      %p167 = scmp.ne.s32.totalorder %s156, %s159
      %p168 = scmp.eq.s32.totalorder %s18, 1
      %p169 = por %p167, %p168
      %p170 = scmp.ne.s32.totalorder %s159, %s160
      %p171 = scmp.eq.s32.totalorder %s18, 0
      %p172 = por %p170, %p171
      %p173 = scmp.ne.s32.totalorder %s159, %s160
      %p174 = scmp.eq.s32.totalorder %s19, 1
      %p175 = por %p173, %p174
      %p177 = scmp.ne.s32.totalorder %s160, %s176
      %p178 = scmp.eq.s32.totalorder %s19, 0
      %p179 = por %p177, %p178
      %p180 = scmp.le.s32.totalorder 1, %s13
      %p181 = scmp.lt.s32.totalorder %s13, 3
      %p182 = pnand %p180, %p181
      %p183 = pneg %p182
      // Predicated region
      $region9: #{tpu_custom_call.1} parent=5 // pred_check
        _
      $region10: #{tpu_custom_call.1} parent=5 // pred_check_branch
        %185 = sbr.rel (%p182) target = $region12
      $region11: #{tpu_custom_call.1} parent=5 // pred_region
        %s186 = ssub.s32 %s13, 1
        // Predicated region
        $region13: #{tpu_custom_call.1} parent=11 // pred_check
          %p187 = pneg %p116
        $region14: #{tpu_custom_call.1} parent=11 // pred_check_branch
          %189 = sbr.rel (%p187) target = $region16
        $region15: #{tpu_custom_call.1} parent=11 // pred_region
          %p190 = scmp.lt.s32.totalorder %s23, 0
          %s191 = scalar_select %p190, %s23, 0
          %s192 = smul.addr %s191, 4
          %s193 = scalar_lea.vmem %s2, %s192
        $region16: #{tpu_custom_call.1} parent=11 // pred_fallthru
          _
        // Predicated region
        $region17: #{tpu_custom_call.1} parent=11 // pred_check
          %p194 = pneg %p142
        $region18: #{tpu_custom_call.1} parent=11 // pred_check_branch
          %196 = sbr.rel (%p194) target = $region20
        $region19: #{tpu_custom_call.1} parent=11 // pred_region
          %p197 = scmp.lt.s32.totalorder %s23, 0
          %s198 = scalar_select %p197, %s23, 0
          %s199 = scalar_lea.vmem %s3, %s198
        $region20: #{tpu_custom_call.1} parent=11 // pred_fallthru
          _
      $region12: #{tpu_custom_call.1} parent=5 // pred_fallthru
        _
      %p200 = scmp.lt.s32.totalorder %s13, 2
      // Predicated region
      $region21: #{tpu_custom_call.1} parent=5 // pred_check
        %p201 = pneg %p200
      $region22: #{tpu_custom_call.1} parent=5 // pred_check_branch
        %203 = sbr.rel (%p201) target = $region24
      $region23: #{tpu_custom_call.1} parent=5 // pred_region
        // Predicated region
        $region25: #{tpu_custom_call.1} parent=23 // pred_check
          %p204 = pneg %p54
        $region26: #{tpu_custom_call.1} parent=23 // pred_check_branch
          %206 = sbr.rel (%p204) target = $region28
        $region27: #{tpu_custom_call.1} parent=23 // pred_region
          %s207 = smul.u32 2, %s22
          %p208 = scmp.lt.s32.totalorder %s21, 1
          %s209 = scalar_select %p208, %s21, 1
          %p210 = scmp.lt.s32.totalorder %s207, 3
          %s211 = scalar_select %p210, %s207, 3
          %s212 = smul.addr %s209, 4
          %s213 = sadd.s32 %s211, %s212
          %s214 = smul.addr %s213, 4
          %s215 = scalar_lea.vmem %s0, %s214
          %s216 = smul.u32 2, %s22
        $region28: #{tpu_custom_call.1} parent=23 // pred_fallthru
          _
        // Predicated region
        $region29: #{tpu_custom_call.1} parent=23 // pred_check
          %p217 = pneg %p84
        $region30: #{tpu_custom_call.1} parent=23 // pred_check_branch
          %219 = sbr.rel (%p217) target = $region32
        $region31: #{tpu_custom_call.1} parent=23 // pred_region
          %s220 = sadd.s32 %s22, 1
          %s221 = smul.u32 2, %s220
          %p222 = scmp.lt.s32.totalorder %s21, 1
          %s223 = scalar_select %p222, %s21, 1
          %p224 = scmp.lt.s32.totalorder %s221, 3
          %s225 = scalar_select %p224, %s221, 3
          %s226 = smul.addr %s223, 4
          %s227 = sadd.s32 %s225, %s226
          %s228 = smul.addr %s227, 4
          %s229 = scalar_lea.vmem %s1, %s228
          %s230 = sadd.s32 %s22, 1
          %s231 = smul.u32 2, %s230
        $region32: #{tpu_custom_call.1} parent=23 // pred_fallthru
          _
      $region24: #{tpu_custom_call.1} parent=5 // pred_fallthru
        _
      %p232 = scmp.le.s32.totalorder 1, %s13
      %p233 = scmp.lt.s32.totalorder %s13, 3
      %p234 = pnand %p232, %p233
      %p235 = pneg %p234
      // Predicated region
      $region33: #{tpu_custom_call.1} parent=5 // pred_check
        _
      $region34: #{tpu_custom_call.1} parent=5 // pred_check_branch
        %237 = sbr.rel (%p234) target = $region36
      $region35: #{tpu_custom_call.1} parent=5 // pred_region
        %s238 = ssub.s32 %s13, 1
        %s239 = smul.u32 2, %s25
        %p240 = scmp.lt.s32.totalorder %s24, 1
        %s241 = scalar_select %p240, %s24, 1
        %p242 = scmp.lt.s32.totalorder %s239, 3
        %s243 = scalar_select %p242, %s239, 3
        %s244 = smul.addr %s241, 4
        %s245 = sadd.s32 %s243, %s244
        %s246 = smul.addr %s245, 4
        %s247 = scalar_lea.vmem %s0, %s246
        %p248 = pneg %p60
        %p249 = pneg %p57
        %s250 = sadd.s32 %s25, 1
        %s251 = smul.u32 2, %s250
        %p252 = scmp.lt.s32.totalorder %s24, 1
        %s253 = scalar_select %p252, %s24, 1
        %p254 = scmp.lt.s32.totalorder %s251, 3
        %s255 = scalar_select %p254, %s251, 3
        %s256 = smul.addr %s253, 4
        %s257 = sadd.s32 %s255, %s256
        %s258 = smul.addr %s257, 4
        %s259 = scalar_lea.vmem %s1, %s258
        %p260 = pneg %p90
        %p261 = pneg %p87
        %p262 = scmp.lt.s32.totalorder %s23, 0
        %s263 = scalar_select %p262, %s23, 0
        %s264 = smul.addr %s263, 4
        %s265 = scalar_lea.vmem %s2, %s264
        %p266 = pneg %p116
        %p267 = pneg %p113
        %p268 = scmp.lt.s32.totalorder %s23, 0
        %s269 = scalar_select %p268, %s23, 0
        %s270 = scalar_lea.vmem %s3, %s269
        %p271 = pneg %p142
        %p272 = pneg %p139
        %p273 = pneg %p172
        %p274 = pneg %p169
        %s275 = sand.u32 %s159, 1
        %s276 = scalar_lea.sflag [#allocation3], %s275
        %s277 = sand.u32 %s159, 1
        %s278 = smul.addr %s277, 16
        %s279 = scalar_lea.vmem [#allocation2], %s278
        %s280 = smul.u32 2, %s25
        %p281 = scmp.lt.s32.totalorder %s24, 1
        %s282 = scalar_select %p281, %s24, 1
        %p283 = scmp.lt.s32.totalorder %s280, 3
        %s284 = scalar_select %p283, %s280, 3
        %s285 = smul.addr %s282, 4
        %s286 = sadd.s32 %s284, %s285
        %s287 = smul.addr %s286, 4
        %s288 = scalar_lea.vmem %s0, %s287
        %s289 = smul.u32 2, %s25
        %s290 = sadd.s32 %s25, 1
        %s291 = smul.u32 2, %s290
        %p292 = scmp.lt.s32.totalorder %s24, 1
        %s293 = scalar_select %p292, %s24, 1
        %p294 = scmp.lt.s32.totalorder %s291, 3
        %s295 = scalar_select %p294, %s291, 3
        %s296 = smul.addr %s293, 4
        %s297 = sadd.s32 %s295, %s296
        %s298 = smul.addr %s297, 4
        %s299 = scalar_lea.vmem %s1, %s298
        %s300 = sadd.s32 %s25, 1
        %s301 = smul.u32 2, %s300
        %p302 = scmp.lt.s32.totalorder %s23, 0
        %s303 = scalar_select %p302, %s23, 0
        %s304 = smul.addr %s303, 4
        %s305 = scalar_lea.vmem %s2, %s304
        %p306 = scmp.lt.s32.totalorder %s23, 0
        %s307 = scalar_select %p306, %s23, 0
        %s308 = scalar_lea.vmem %s3, %s307
        %s309 = smul.u32 2, %s25
        %v311 = vld [vmem:[%s288] sm:$0xf]
        %v312 = vld [vmem:[%s288 + $0x4] sm:$0xf]
        %v313 = vld [vmem:[%s299] sm:$0xf]
        %v314 = vld [vmem:[%s299 + $0x4] sm:$0xf]
        %v317 = vunpack.c.l.b16 %v311
        %v318 = vunpack.c.l.b16 %v312
        %v319 = vpack.c.b16 %v318, %v317
        %v322 = vunpack.c.l.b16 %v313
        %v323 = vunpack.c.l.b16 %v314
        %v324 = vpack.c.b16 %v323, %v322
        %vm325 = vsmask.f32 7424
        %v327 = vshrl.u32 %v319, 16
        %v329 = vshll.u32 %v319, 16
        %v331 = vrot.slane %v329, 1
        %v332 = vor.u32 %v327, %v331
        %v334 = vshll.u32 %v324, 16
        %v336 = vrot.slane %v334, 1
        %v337 = vsel %vm325, %v332, %v336
        %338 = vrot.lane.b32.xlu0 %v337, 16
        %v339 = vpop.permute.xlu0 %338
        %vm340 = vcmask 130048
        %v342 = vsel %vm340, %v319, %v339
        %vm343 = vcmask 261120
        %v345 = vsel %vm343, %v342, 0
        %v347 = vld [vmem:[%s305] sm:$0xf]
        %v348 = vld [vmem:[%s305 + $0x4] sm:$0xf]
        %v349 = vld [vmem:[%s305 + $0x8] sm:$0xf]
        %v350 = vld [vmem:[%s305 + $0xc] sm:$0xf]
        %v351 = vld [vmem:[%s305 + $0x10] sm:$0xf]
        %v352 = vld [vmem:[%s305 + $0x14] sm:$0xf]
        %v353 = vld [vmem:[%s305 + $0x18] sm:$0xf]
        %v354 = vld [vmem:[%s305 + $0x1c] sm:$0xf]
        %v355 = vld [vmem:[%s305 + $0x20] sm:$0xf]
        %v356 = vld [vmem:[%s305 + $0x24] sm:$0xf]
        %v357 = vld [vmem:[%s305 + $0x28] sm:$0xf]
        %v358 = vld [vmem:[%s305 + $0x2c] sm:$0xf]
        %v359 = vld [vmem:[%s305 + $0x30] sm:$0xf]
        %v360 = vld [vmem:[%s305 + $0x34] sm:$0xf]
        %v361 = vld [vmem:[%s305 + $0x38] sm:$0xf]
        %v362 = vld [vmem:[%s305 + $0x3c] sm:$0xf]
        %v363 = vld [vmem:[%s308] sm:$0x1]
        %v365 = vlaneseq
        %v366 = vshrl.u32 %v365, 7
        %v367 = vsub.s32 0, %v366
        %v368 = vrot.slane %v363, %v367
        %v386 = vunpack.c.l.b16 %v347
        %v387 = vunpack.c.l.b16 %v348
        %v388 = vunpack.c.l.b16 %v349
        %v389 = vunpack.c.l.b16 %v350
        %v390 = vunpack.c.l.b16 %v351
        %v391 = vunpack.c.l.b16 %v352
        %v392 = vunpack.c.l.b16 %v353
        %v393 = vunpack.c.l.b16 %v354
        %v394 = vunpack.c.l.b16 %v355
        %v395 = vunpack.c.l.b16 %v356
        %v396 = vunpack.c.l.b16 %v357
        %v397 = vunpack.c.l.b16 %v358
        %v398 = vunpack.c.l.b16 %v359
        %v399 = vunpack.c.l.b16 %v360
        %v400 = vunpack.c.l.b16 %v361
        %v401 = vunpack.c.l.b16 %v362
        %v402 = vpack.c.b16 %v387, %v386
        %v403 = vpack.c.b16 %v389, %v388
        %v404 = vpack.c.b16 %v391, %v390
        %v405 = vpack.c.b16 %v393, %v392
        %v406 = vpack.c.b16 %v395, %v394
        %v407 = vpack.c.b16 %v397, %v396
        %v408 = vpack.c.b16 %v399, %v398
        %v409 = vpack.c.b16 %v401, %v400
        %418 = vmatprep.subr.bf16.mxu0 0
        %419 = vmatpush1.bf16.msra.mxu0 %v409
        %420 = vmatprep.subr.bf16.mxu0 0
        %421 = vmatpush1.bf16.msra.mxu0 %v408
        %422 = vmatprep.subr.bf16.mxu0 0
        %423 = vmatpush1.bf16.msra.mxu0 %v407
        %424 = vmatprep.subr.bf16.mxu0 0
        %425 = vmatpush1.bf16.msra.mxu0 %v406
        %426 = vmatprep.subr.bf16.mxu0 0
        %427 = vmatpush1.bf16.msra.mxu0 %v405
        %428 = vmatprep.subr.bf16.mxu0 0
        %429 = vmatpush1.bf16.msra.mxu0 %v404
        %430 = vmatprep.subr.bf16.mxu0 0
        %431 = vmatpush1.bf16.msra.mxu0 %v403
        %432 = vmatprep.subr.bf16.mxu0 0
        %433 = vmatpush1.bf16.msra.mxu0 %v402
        %434 = vmatprep.subr.bf16.mxu0 0
        %435 = vmatpush2.bf16.msra.mxu0 0
        %436 = vmatprep.subr.bf16.mxu0 0
        %437 = vmatpush2.bf16.msra.mxu0 0
        %438 = vmatprep.subr.bf16.mxu0 0
        %439 = vmatpush2.bf16.msra.mxu0 0
        %440 = vmatprep.subr.bf16.mxu0 0
        %441 = vmatpush2.bf16.msra.mxu0 0
        %442 = vmatprep.subr.bf16.mxu0 0
        %443 = vmatpush2.bf16.msra.mxu0 0
        %444 = vmatprep.subr.bf16.mxu0 0
        %445 = vmatpush2.bf16.msra.mxu0 0
        %446 = vmatprep.subr.bf16.mxu0 0
        %447 = vmatpush2.bf16.msra.mxu0 0
        %448 = vmatprep.subr.bf16.mxu0 0
        %449 = vmatpush2.bf16.msra.mxu0 0
        %450 = vmatprep.mubr.bf16.mxu0 0
        %451 = vmatmul.mubr.bf16.gmra.mxu0 %v345
        %v452 = vpop.f32.mrf.mxu0
        %v453 = vadd.f32 %v368, %v452
        %v454 = vpop.f32.mrf.mxu0
        %v455 = vpop.f32.mrf.mxu0
        %v456 = vadd.f32 %v368, %v455
        %v457 = vpop.f32.mrf.mxu0
        %458 = vdwg.mxu0
        %v459 = vmax.f32 %v453, 0.0
        %v460 = vmax.f32 %v456, 0.0
        %461 = vst [vmem:[%s279] sm:$0xff] %v459
        %462 = vst [vmem:[%s279 + $0x8] sm:$0xff] %v460
        %s463 = sand.u32 %s159, 1
        %s464 = scalar_lea.sflag [#allocation3], %s463
        %s465 = sand.u32 %s159, 1
        %s466 = smul.addr %s465, 16
        %s467 = scalar_lea.vmem [#allocation2], %s466
        // Predicated region
        $region37: #{tpu_custom_call.1} parent=35 // pred_check
          %p468 = pneg %p169
        $region38: #{tpu_custom_call.1} parent=35 // pred_check_branch
          %470 = sbr.rel (%p468) target = $region40
        $region39: #{tpu_custom_call.1} parent=35 // pred_region
          %s471 = smul.u32 2, %s25
          %s473 = ssub.s32 256, 256
          %474 = vsyncadd %s464, %s473
          %s475 = sadd.s32 %s23, %s471
          %s476 = smul.addr %s24, 2
          %s477 = sadd.s32 %s475, %s476
          %s478 = smul.addr %s477, 128
          %s479 = scalar_lea.hbm %s4, %s478
          %s480 = sshll.u32 %s467, 4
          %s481 = int_to_ptr.vmem [resolvable:$true] %s480
          %486 = dma.vmem_to_hbm [thread:$0]  %s481, 256, %s479, %s464, 128, 128, 8
        $region40: #{tpu_custom_call.1} parent=35 // pred_fallthru
          _
      $region36: #{tpu_custom_call.1} parent=5 // pred_fallthru
        _
      %p487 = scmp.le.s32.totalorder 2, %s13
      // Predicated region
      $region41: #{tpu_custom_call.1} parent=5 // pred_check
        %p488 = pneg %p487
      $region42: #{tpu_custom_call.1} parent=5 // pred_check_branch
        %490 = sbr.rel (%p488) target = $region44
      $region43: #{tpu_custom_call.1} parent=5 // pred_region
        %s491 = ssub.s32 %s13, 2
        // Predicated region
        $region45: #{tpu_custom_call.1} parent=43 // pred_check
          %p492 = pneg %p175
        $region46: #{tpu_custom_call.1} parent=43 // pred_check_branch
          %494 = sbr.rel (%p492) target = $region48
        $region47: #{tpu_custom_call.1} parent=43 // pred_region
          %s495 = sand.u32 %s160, 1
          %s496 = scalar_lea.sflag [#allocation3], %s495
          %s497 = sand.u32 %s160, 1
          %s498 = smul.addr %s497, 16
          %s499 = scalar_lea.vmem [#allocation2], %s498
          %500 = dma.done %s496, 256
        $region48: #{tpu_custom_call.1} parent=43 // pred_fallthru
          _
      $region44: #{tpu_custom_call.1} parent=5 // pred_fallthru
        _
    $region6: #{tpu_custom_call.1} parent=1 // loop_footer
      %s17 = sadd.s32 1, %s13
    $region7: #{tpu_custom_call.1} parent=1 // loop_footer_branch
      %12 = sbr.rel target = $region3
    $region8: #{tpu_custom_call.1} parent=1 // loop_exit
      _
    %501 = vsyncpa [#allocation3], 1
    %s502 = scalar_lea.sflag [#allocation3], 1
    %503 = vsyncpa %s502, 1

</llo_original>
